<compile_context>
chip_gen: v5e
topology: v5e:2x2
jax: 0.10.0
libtpu: 0.0.40
codegen_flags: <defaults>
</compile_context>

<pallas_src>
import functools

import jax
import jax.numpy as jnp
from jax.experimental import pallas as pl
from jax.experimental.pallas import tpu as pltpu


# ---------------------------------------------------------------------------
# Fused 3x3 (s=1, p=1) conv + folded-BN bias + ReLU.  One program per image.
# ---------------------------------------------------------------------------
def _conv3x3_bn_relu_kernel(x_ref, w_ref, b_ref, o_ref, *, h, w, cin):
    # x_ref : (1, cin, h*w)   f32   raw NCHW activation, spatially flattened
    # w_ref : (cout, 9*cin)   bf16  BN-folded weights (K = tap-major, ch-minor)
    # b_ref : (cout, 1)       f32   BN-folded bias
    # o_ref : (1, cout, h*w)  f32   NCHW-flat output block (lane-dense, 256 lanes)
    hw = h * w
    pad = w + 1

    x = x_ref[0].astype(jnp.bfloat16)                      # (cin, hw), cast in-kernel
    zeros = jnp.zeros((cin, pad), jnp.bfloat16)
    # Zero-extend the flat spatial axis so every tap shift is an in-bounds slice
    # and out-of-range rows (dh = +-1 at the image top/bottom) read zeros.
    xe = jnp.concatenate([zeros, x, zeros], axis=1)        # (cin, hw + 2*(w+1))
    col = jax.lax.broadcasted_iota(jnp.int32, (cin, hw), 1) % w

    taps = []
    for kh in range(3):                                    # static unroll, 9 taps
        for kw in range(3):
            dh, dw = kh - 1, kw - 1
            start = pad + dh * w + dw
            t = jax.lax.slice_in_dim(xe, start, start + hw, axis=1)  # (cin, hw)
            if dw != 0:
                # mask columns that wrapped across a row boundary (left/right pad)
                valid = (col + dw >= 0) & (col + dw < w)
                t = jnp.where(valid, t, jnp.zeros_like(t))
            taps.append(t)

    # im2col LHS^T, built once in VMEM: K = 9*cin rows, H*W lane-dense columns.
    lhs_t = jnp.concatenate(taps, axis=0)                  # (9*cin, hw) bf16

    # Single MXU matmul, f32 accumulation, then fused bias + ReLU epilogue.
    y = jnp.dot(w_ref[...], lhs_t,
                preferred_element_type=jnp.float32)        # (cout, hw)
    o_ref[0] = jnp.maximum(y + b_ref[...], 0.0).astype(o_ref.dtype)


# ---------------------------------------------------------------------------
# Parameter construction (deterministic synthetic weights, BN folded at init)
# ---------------------------------------------------------------------------
def make_pang_unit(key, cin, cout, bn=True, eps=1e-5):
    k_w, k_b, k_g, k_beta, k_m, k_v = jax.random.split(key, 6)
    w = 0.05 * jax.random.normal(k_w, (3, 3, cin, cout), jnp.float32)   # HWIO
    b = 0.05 * jax.random.normal(k_b, (cout,), jnp.float32)             # bias=True

    if bn:  # fold eval-mode BatchNorm2d(eps=1e-5) into conv weight + bias
        gamma = 1.0 + 0.1 * jax.random.normal(k_g, (cout,), jnp.float32)
        beta = 0.1 * jax.random.normal(k_beta, (cout,), jnp.float32)
        mean = 0.1 * jax.random.normal(k_m, (cout,), jnp.float32)
        var = 1.0 + 0.1 * jnp.abs(jax.random.normal(k_v, (cout,), jnp.float32))
        scale = gamma / jnp.sqrt(var + eps)
        w = w * scale
        b = (b - mean) * scale + beta

    # (cout, 9*cin) bf16, K ordered tap-major then channel — matches the kernel's
    # lhs_t row order.  Cast once here; no padding to 128 output channels.
    w_mxu = jnp.transpose(w.reshape(9 * cin, cout), (1, 0)).astype(jnp.bfloat16)
    return dict(w=w_mxu, b=b.reshape(cout, 1),
                w_f32=w, b_f32=b)          # f32 copies only for the reference check


# ---------------------------------------------------------------------------
# Forward pass (matches Pang_unit.forward: x0 = branch0(x)); x is NCHW.
# ---------------------------------------------------------------------------
def pang_unit_forward(params, x_nchw):
    w2, b2 = params["w"], params["b"]
    n, cin, h, wd = x_nchw.shape
    cout = b2.shape[0]
    hw = h * wd
    assert w2.shape == (cout, 9 * cin)

    # Contiguous reshape only (metadata, no HBM pass): NCHW -> (N, cin, H*W).
    x_flat = x_nchw.reshape(n, cin, hw)

    # Rough per-program VMEM need: double-buffered blocks + in-kernel temps.
    vmem_est = (2 * (cin * hw * 4 + cout * 9 * cin * 2 + cout * 4 + cout * hw * 4)
                + cin * (hw + 2 * (wd + 1)) * 2      # xe
                + 2 * 9 * cin * hw * 2               # taps + lhs_t
                + cout * hw * 4)                     # y
    vmem_limit = 32 * 1024 * 1024
    # TODO(synk): if this trips (large H*W), switch to a row-tiled grid w/ halo.
    assert vmem_est < vmem_limit // 2, "per-image tile too large; row-tile the grid"

    kernel = functools.partial(_conv3x3_bn_relu_kernel, h=h, w=wd, cin=cin)
    flops = 2 * n * hw * 9 * cin * cout
    bytes_accessed = (x_flat.size * 4 + w2.size * 2 + b2.size * 4
                      + n * cout * hw * 4)

    out = pl.pallas_call(
        kernel,
        out_shape=jax.ShapeDtypeStruct((n, cout, hw), jnp.float32),
        grid_spec=pltpu.PrefetchScalarGridSpec(
            num_scalar_prefetch=0,
            grid=(n,),
            in_specs=[
                pl.BlockSpec((1, cin, hw), lambda i: (i, 0, 0)),
                pl.BlockSpec((cout, 9 * cin), lambda i: (0, 0)),
                pl.BlockSpec((cout, 1), lambda i: (0, 0)),
            ],
            out_specs=pl.BlockSpec((1, cout, hw), lambda i: (i, 0, 0)),
        ),
        compiler_params=pltpu.CompilerParams(
            dimension_semantics=("parallel",),
            vmem_limit_bytes=vmem_limit),
        cost_estimate=pl.CostEstimate(flops=flops, transcendentals=0,
                                      bytes_accessed=bytes_accessed),
    )(x_flat, w2, b2)

    # Metadata-only reshape back to NCHW (output is already channel-major).
    return out.reshape(n, cout, h, wd)


# ---------------------------------------------------------------------------
# Pure-JAX f32 reference (validates the bf16 MXU path)
# ---------------------------------------------------------------------------
def _reference_f32(params, x_nchw):
    w, b = params["w_f32"], params["b_f32"]          # (3,3,cin,cout), (cout,)
    y = jax.lax.conv_general_dilated(
        x_nchw, jnp.transpose(w, (3, 2, 0, 1)),      # HWIO -> OIHW
        window_strides=(1, 1), padding=((1, 1), (1, 1)),
        dimension_numbers=("NCHW", "OIHW", "NCHW"))
    y = y + b[None, :, None, None]
    return jnp.maximum(y, 0.0)


if __name__ == "__main__":
    key = jax.random.PRNGKey(0)
    k_p, k_x = jax.random.split(key)

    cin, cout = 4, 16
    params = make_pang_unit(k_p, cin, cout, bn=True)
    x = jax.random.normal(k_x, (2, cin, 16, 16), jnp.float32)    # NCHW

    fwd = jax.jit(pang_unit_forward)
    out = jax.block_until_ready(fwd(params, x))

    assert out.shape == (2, cout, 16, 16), out.shape
    assert bool(jnp.all(jnp.isfinite(out)))

    ref = _reference_f32(params, x)
    err = float(jnp.max(jnp.abs(out - ref)))
    assert err < 5e-2, f"max abs err vs f32 reference: {err}"

    print("KERNEL_OK")
</pallas_src>

<mosaic_0001>
module attributes {stable_mosaic.version = 11 : i64} {
  func.func @_conv3x3_bn_relu_kernel(%arg0: i32, %arg1: memref<1x4x256xf32, #tpu.memory_space<vmem>>, %arg2: memref<16x36xbf16, #tpu.memory_space<vmem>>, %arg3: memref<16x1xf32, #tpu.memory_space<vmem>>, %arg4: memref<1x16x256xf32, #tpu.memory_space<vmem>>) attributes {dimension_semantics = [#tpu.dimension_semantics<parallel>], iteration_bounds = array<i64: 2>, scalar_prefetch = 0 : i64, scratch_operands = 0 : i64, tpu.core_type = #tpu.core_type<tc>, window_params = [{transform_indices = @transform_0, window_bounds = array<i64: 1, 4, 256>}, {pipeline_mode = #tpu.pipeline_mode<synchronous>, transform_indices = @transform_1, window_bounds = array<i64: 16, 36>}, {pipeline_mode = #tpu.pipeline_mode<synchronous>, transform_indices = @transform_2, window_bounds = array<i64: 16, 1>}, {transform_indices = @transform_3, window_bounds = array<i64: 1, 16, 256>}]} {
    %c0 = arith.constant 0 : index
    %c0_0 = arith.constant 0 : index
    %c0_1 = arith.constant 0 : index
    %0 = vector.load %arg1[%c0, %c0_0, %c0_1] : memref<1x4x256xf32, #tpu.memory_space<vmem>>, vector<1x4x256xf32>
    %1 = vector.shape_cast %0 : vector<1x4x256xf32> to vector<4x256xf32>
    %2 = arith.truncf %1 : vector<4x256xf32> to vector<4x256xbf16>
    %cst = arith.constant 0.000000e+00 : bf16
    %3 = vector.broadcast %cst : bf16 to vector<4x17xbf16>
    %4 = tpu.concatenate %3, %2, %3 in 1 : vector<4x17xbf16>, vector<4x256xbf16>, vector<4x17xbf16> -> vector<4x290xbf16>
    %5 = tpu.iota {dimensions = array<i32: 1>} : vector<4x256xi32>
    %c16_i32 = arith.constant 16 : i32
    %c0_i32 = arith.constant 0 : i32
    %6 = arith.cmpi eq, %c16_i32, %c0_i32 : i32
    %c1_i32 = arith.constant 1 : i32
    %7 = arith.select %6, %c1_i32, %c16_i32 : i32
    %8 = vector.broadcast %7 : i32 to vector<4x256xi32>
    %9 = arith.remsi %5, %8 : vector<4x256xi32>
    %c0_i32_2 = arith.constant 0 : i32
    %10 = vector.broadcast %c0_i32_2 : i32 to vector<4x256xi32>
    %11 = arith.cmpi ne, %9, %10 : vector<4x256xi32>
    %c0_i32_3 = arith.constant 0 : i32
    %12 = vector.broadcast %c0_i32_3 : i32 to vector<4x256xi32>
    %13 = arith.cmpi slt, %9, %12 : vector<4x256xi32>
    %c0_i32_4 = arith.constant 0 : i32
    %14 = arith.cmpi slt, %7, %c0_i32_4 : i32
    %15 = vector.broadcast %14 : i1 to vector<4x256xi1>
    %16 = vector.broadcast %15 : vector<4x256xi1> to vector<4x256xi1>
    %17 = arith.xori %13, %16 : vector<4x256xi1>
    %18 = arith.andi %17, %11 : vector<4x256xi1>
    %19 = vector.broadcast %7 : i32 to vector<4x256xi32>
    %20 = arith.addi %9, %19 : vector<4x256xi32>
    %21 = arith.select %18, %20, %9 : vector<4x256xi1>, vector<4x256xi32>
    %22 = vector.extract_strided_slice %4 {offsets = [0, 0], sizes = [4, 256], strides = [1, 1]} : vector<4x290xbf16> to vector<4x256xbf16>
    %c-1_i32 = arith.constant -1 : i32
    %23 = vector.broadcast %c-1_i32 : i32 to vector<4x256xi32>
    %24 = arith.addi %21, %23 : vector<4x256xi32>
    %c0_i32_5 = arith.constant 0 : i32
    %25 = vector.broadcast %c0_i32_5 : i32 to vector<4x256xi32>
    %26 = arith.cmpi sge, %24, %25 : vector<4x256xi32>
    %c-1_i32_6 = arith.constant -1 : i32
    %27 = vector.broadcast %c-1_i32_6 : i32 to vector<4x256xi32>
    %28 = arith.addi %21, %27 : vector<4x256xi32>
    %c16_i32_7 = arith.constant 16 : i32
    %29 = vector.broadcast %c16_i32_7 : i32 to vector<4x256xi32>
    %30 = arith.cmpi slt, %28, %29 : vector<4x256xi32>
    %31 = arith.andi %26, %30 : vector<4x256xi1>
    %cst_8 = arith.constant 0.000000e+00 : bf16
    %32 = vector.broadcast %cst_8 : bf16 to vector<4x256xbf16>
    %33 = arith.select %31, %22, %32 : vector<4x256xi1>, vector<4x256xbf16>
    %34 = vector.extract_strided_slice %4 {offsets = [0, 1], sizes = [4, 256], strides = [1, 1]} : vector<4x290xbf16> to vector<4x256xbf16>
    %35 = vector.extract_strided_slice %4 {offsets = [0, 2], sizes = [4, 256], strides = [1, 1]} : vector<4x290xbf16> to vector<4x256xbf16>
    %c1_i32_9 = arith.constant 1 : i32
    %36 = vector.broadcast %c1_i32_9 : i32 to vector<4x256xi32>
    %37 = arith.addi %21, %36 : vector<4x256xi32>
    %c0_i32_10 = arith.constant 0 : i32
    %38 = vector.broadcast %c0_i32_10 : i32 to vector<4x256xi32>
    %39 = arith.cmpi sge, %37, %38 : vector<4x256xi32>
    %c1_i32_11 = arith.constant 1 : i32
    %40 = vector.broadcast %c1_i32_11 : i32 to vector<4x256xi32>
    %41 = arith.addi %21, %40 : vector<4x256xi32>
    %c16_i32_12 = arith.constant 16 : i32
    %42 = vector.broadcast %c16_i32_12 : i32 to vector<4x256xi32>
    %43 = arith.cmpi slt, %41, %42 : vector<4x256xi32>
    %44 = arith.andi %39, %43 : vector<4x256xi1>
    %cst_13 = arith.constant 0.000000e+00 : bf16
    %45 = vector.broadcast %cst_13 : bf16 to vector<4x256xbf16>
    %46 = arith.select %44, %35, %45 : vector<4x256xi1>, vector<4x256xbf16>
    %47 = vector.extract_strided_slice %4 {offsets = [0, 16], sizes = [4, 256], strides = [1, 1]} : vector<4x290xbf16> to vector<4x256xbf16>
    %c-1_i32_14 = arith.constant -1 : i32
    %48 = vector.broadcast %c-1_i32_14 : i32 to vector<4x256xi32>
    %49 = arith.addi %21, %48 : vector<4x256xi32>
    %c0_i32_15 = arith.constant 0 : i32
    %50 = vector.broadcast %c0_i32_15 : i32 to vector<4x256xi32>
    %51 = arith.cmpi sge, %49, %50 : vector<4x256xi32>
    %c-1_i32_16 = arith.constant -1 : i32
    %52 = vector.broadcast %c-1_i32_16 : i32 to vector<4x256xi32>
    %53 = arith.addi %21, %52 : vector<4x256xi32>
    %c16_i32_17 = arith.constant 16 : i32
    %54 = vector.broadcast %c16_i32_17 : i32 to vector<4x256xi32>
    %55 = arith.cmpi slt, %53, %54 : vector<4x256xi32>
    %56 = arith.andi %51, %55 : vector<4x256xi1>
    %cst_18 = arith.constant 0.000000e+00 : bf16
    %57 = vector.broadcast %cst_18 : bf16 to vector<4x256xbf16>
    %58 = arith.select %56, %47, %57 : vector<4x256xi1>, vector<4x256xbf16>
    %59 = vector.extract_strided_slice %4 {offsets = [0, 17], sizes = [4, 256], strides = [1, 1]} : vector<4x290xbf16> to vector<4x256xbf16>
    %60 = vector.extract_strided_slice %4 {offsets = [0, 18], sizes = [4, 256], strides = [1, 1]} : vector<4x290xbf16> to vector<4x256xbf16>
    %c1_i32_19 = arith.constant 1 : i32
    %61 = vector.broadcast %c1_i32_19 : i32 to vector<4x256xi32>
    %62 = arith.addi %21, %61 : vector<4x256xi32>
    %c0_i32_20 = arith.constant 0 : i32
    %63 = vector.broadcast %c0_i32_20 : i32 to vector<4x256xi32>
    %64 = arith.cmpi sge, %62, %63 : vector<4x256xi32>
    %c1_i32_21 = arith.constant 1 : i32
    %65 = vector.broadcast %c1_i32_21 : i32 to vector<4x256xi32>
    %66 = arith.addi %21, %65 : vector<4x256xi32>
    %c16_i32_22 = arith.constant 16 : i32
    %67 = vector.broadcast %c16_i32_22 : i32 to vector<4x256xi32>
    %68 = arith.cmpi slt, %66, %67 : vector<4x256xi32>
    %69 = arith.andi %64, %68 : vector<4x256xi1>
    %cst_23 = arith.constant 0.000000e+00 : bf16
    %70 = vector.broadcast %cst_23 : bf16 to vector<4x256xbf16>
    %71 = arith.select %69, %60, %70 : vector<4x256xi1>, vector<4x256xbf16>
    %72 = vector.extract_strided_slice %4 {offsets = [0, 32], sizes = [4, 256], strides = [1, 1]} : vector<4x290xbf16> to vector<4x256xbf16>
    %c-1_i32_24 = arith.constant -1 : i32
    %73 = vector.broadcast %c-1_i32_24 : i32 to vector<4x256xi32>
    %74 = arith.addi %21, %73 : vector<4x256xi32>
    %c0_i32_25 = arith.constant 0 : i32
    %75 = vector.broadcast %c0_i32_25 : i32 to vector<4x256xi32>
    %76 = arith.cmpi sge, %74, %75 : vector<4x256xi32>
    %c-1_i32_26 = arith.constant -1 : i32
    %77 = vector.broadcast %c-1_i32_26 : i32 to vector<4x256xi32>
    %78 = arith.addi %21, %77 : vector<4x256xi32>
    %c16_i32_27 = arith.constant 16 : i32
    %79 = vector.broadcast %c16_i32_27 : i32 to vector<4x256xi32>
    %80 = arith.cmpi slt, %78, %79 : vector<4x256xi32>
    %81 = arith.andi %76, %80 : vector<4x256xi1>
    %cst_28 = arith.constant 0.000000e+00 : bf16
    %82 = vector.broadcast %cst_28 : bf16 to vector<4x256xbf16>
    %83 = arith.select %81, %72, %82 : vector<4x256xi1>, vector<4x256xbf16>
    %84 = vector.extract_strided_slice %4 {offsets = [0, 33], sizes = [4, 256], strides = [1, 1]} : vector<4x290xbf16> to vector<4x256xbf16>
    %85 = vector.extract_strided_slice %4 {offsets = [0, 34], sizes = [4, 256], strides = [1, 1]} : vector<4x290xbf16> to vector<4x256xbf16>
    %c1_i32_29 = arith.constant 1 : i32
    %86 = vector.broadcast %c1_i32_29 : i32 to vector<4x256xi32>
    %87 = arith.addi %21, %86 : vector<4x256xi32>
    %c0_i32_30 = arith.constant 0 : i32
    %88 = vector.broadcast %c0_i32_30 : i32 to vector<4x256xi32>
    %89 = arith.cmpi sge, %87, %88 : vector<4x256xi32>
    %c1_i32_31 = arith.constant 1 : i32
    %90 = vector.broadcast %c1_i32_31 : i32 to vector<4x256xi32>
    %91 = arith.addi %21, %90 : vector<4x256xi32>
    %c16_i32_32 = arith.constant 16 : i32
    %92 = vector.broadcast %c16_i32_32 : i32 to vector<4x256xi32>
    %93 = arith.cmpi slt, %91, %92 : vector<4x256xi32>
    %94 = arith.andi %89, %93 : vector<4x256xi1>
    %cst_33 = arith.constant 0.000000e+00 : bf16
    %95 = vector.broadcast %cst_33 : bf16 to vector<4x256xbf16>
    %96 = arith.select %94, %85, %95 : vector<4x256xi1>, vector<4x256xbf16>
    %97 = tpu.concatenate %33, %34, %46, %58, %59, %71, %83, %84, %96 in 0 : vector<4x256xbf16>, vector<4x256xbf16>, vector<4x256xbf16>, vector<4x256xbf16>, vector<4x256xbf16>, vector<4x256xbf16>, vector<4x256xbf16>, vector<4x256xbf16>, vector<4x256xbf16> -> vector<36x256xbf16>
    %c0_34 = arith.constant 0 : index
    %c0_35 = arith.constant 0 : index
    %98 = vector.load %arg2[%c0_34, %c0_35] : memref<16x36xbf16, #tpu.memory_space<vmem>>, vector<16x36xbf16>
    %cst_36 = arith.constant dense<0.000000e+00> : vector<16x256xf32>
    %99 = tpu.matmul %98, %97, %cst_36 {dimension_numbers = #tpu.dot_dimension_numbers<[1], [0], [0], [1], [0, 0, 1, 1], [], []>} : vector<16x36xbf16>, vector<36x256xbf16>, vector<16x256xf32> -> vector<16x256xf32>
    %c0_37 = arith.constant 0 : index
    %c0_38 = arith.constant 0 : index
    %100 = vector.load %arg3[%c0_37, %c0_38] : memref<16x1xf32, #tpu.memory_space<vmem>>, vector<16x1xf32>
    %101 = vector.broadcast %100 : vector<16x1xf32> to vector<16x256xf32>
    %102 = arith.addf %99, %101 : vector<16x256xf32>
    %cst_39 = arith.constant 0.000000e+00 : f32
    %103 = vector.broadcast %cst_39 : f32 to vector<16x256xf32>
    %104 = arith.maximumf %102, %103 : vector<16x256xf32>
    %c0_40 = arith.constant 0 : index
    %c0_41 = arith.constant 0 : index
    %c0_42 = arith.constant 0 : index
    %105 = vector.load %arg4[%c0_40, %c0_41, %c0_42] : memref<1x16x256xf32, #tpu.memory_space<vmem>>, vector<1x16x256xf32>
    %106 = vector.shape_cast %105 : vector<1x16x256xf32> to vector<16x256xf32>
    %107 = vector.shape_cast %104 : vector<16x256xf32> to vector<1x16x256xf32>
    tpu.vector_store %arg4[%c0_40, %c0_41, %c0_42], %107 {strides = array<i32>} : memref<1x16x256xf32, #tpu.memory_space<vmem>>, vector<1x16x256xf32>,
    return
  }
  func.func @transform_0(%arg0: i32) -> (i32, i32, i32) {
    %c0_i32 = arith.constant 0 : i32
    %c0_i32_0 = arith.constant 0 : i32
    %c0_i32_1 = arith.constant 0 : i32
    return %arg0, %c0_i32, %c0_i32_0 : i32, i32, i32
  }
  func.func @transform_1(%arg0: i32) -> (i32, i32) {
    %c0_i32 = arith.constant 0 : i32
    %c0_i32_0 = arith.constant 0 : i32
    %c0_i32_1 = arith.constant 0 : i32
    return %c0_i32, %c0_i32_0 : i32, i32
  }
  func.func @transform_2(%arg0: i32) -> (i32, i32) {
    %c0_i32 = arith.constant 0 : i32
    %c0_i32_0 = arith.constant 0 : i32
    %c0_i32_1 = arith.constant 0 : i32
    return %c0_i32, %c0_i32_0 : i32, i32
  }
  func.func @transform_3(%arg0: i32) -> (i32, i32, i32) {
    %c0_i32 = arith.constant 0 : i32
    %c0_i32_0 = arith.constant 0 : i32
    %c0_i32_1 = arith.constant 0 : i32
    return %arg0, %c0_i32, %c0_i32_0 : i32, i32, i32
  }
}

</mosaic_0001>

<llo_original>
// kernel: pang_unit_forward.1
$region0: #{pang_unit_forward.1}
  #allocation0 [shape = 'u32[]', space=smem, size = 0x4, offset = 0x4, fixed_abs, tag = 'smem constant byte address 0x4 - core index']
  #allocation1 [shape = 'u32[72,128]{1,0:T(1,128)}', space=vmem, size = 0x9000, scoped, tag = 'internal scratch']
  %s0 = inlined_call_operand.vmem [shape: f32[2,4,256], index: 0, kind: input, shape index: {}]
  %s1 = inlined_call_operand.vmem [shape: bf16[16,36], index: 1, kind: input, shape index: {}]
  %s2 = inlined_call_operand.vmem [shape: f32[16,1], index: 2, kind: input, shape index: {}]
  %s3 = inlined_call_operand.vmem [shape: f32[2,16,256], index: 3, kind: output, shape index: {}]
  %s4 = sld [smem:[#allocation0]]
  $region45: #{pang_unit_forward.1} parent=0
    _
  %s6 = ssub.s32 1, %s4
  %s7 = scalar_select 0, %s6, %s4
  loop: start=0, step=1, limit=4
  $region2: #{pang_unit_forward.1} parent=0 // loop_pre_header
    _
  $region3: #{pang_unit_forward.1} parent=0 // loop_header
    %s9 = sphi 0, %s13
    %p10 = scmp.ge.s32.totalorder %s9, 4
    %s19 = sphi 0, %s21
    %s22 = sphi 0, %s19
    %s23 = sphi 0, %s22
    %s39 = sphi 0, %s23
    %s43 = sphi 0, %s43
    %s45 = sphi 0, %s43
    %s46 = sphi 0, %s45
    %s60 = sphi 0, %s46
    %s64 = sphi 0, %s64
    %s66 = sphi 0, %s64
    %s67 = sphi 0, %s66
    %s81 = sphi 0, %s67
    %s87 = sphi 0, %s89
    %s90 = sphi 0, %s87
    %s91 = sphi 0, %s90
    %s107 = sphi 0, %s91
  $region4: #{pang_unit_forward.1} parent=0 // loop_header_branch
    %12 = sbr.rel (%p10) target = $region8
  $region5: #{pang_unit_forward.1} parent=0 // loop_body
    %s14 = ssub.s32 %s9, 1
    %s15 = ssub.s32 %s9, 2
    %s16 = sadd.s32 %s9, 1
    %s17 = ssub.s32 %s9, %s16
    %p18 = scmp.eq.s32.totalorder %s17, 0
    %s20 = sadd.s32 %s19, 1
    %s21 = scalar_select %p18, %s19, %s20
    %p24 = pneg %p18
    %p25 = scmp.eq.s32.totalorder %s9, 1
    %p26 = por %p24, %p25
    %p27 = scmp.ne.s32.totalorder %s19, %s22
    %p28 = scmp.eq.s32.totalorder %s9, 0
    %p29 = por %p27, %p28
    %p30 = scmp.ne.s32.totalorder %s19, %s22
    %p31 = scmp.eq.s32.totalorder %s14, 1
    %p32 = por %p30, %p31
    %p33 = scmp.ne.s32.totalorder %s22, %s23
    %p34 = scmp.eq.s32.totalorder %s14, 0
    %p35 = por %p33, %p34
    %p36 = scmp.ne.s32.totalorder %s22, %s23
    %p37 = scmp.eq.s32.totalorder %s15, 1
    %p38 = por %p36, %p37
    %p40 = scmp.ne.s32.totalorder %s23, %s39
    %p41 = scmp.eq.s32.totalorder %s15, 0
    %p42 = por %p40, %p41
    %s44 = sadd.s32 %s43, 1
    %p47 = scmp.eq.s32.totalorder %s9, 1
    %p48 = scmp.ne.s32.totalorder %s43, %s45
    %p49 = scmp.eq.s32.totalorder %s9, 0
    %p50 = por %p48, %p49
    %p51 = scmp.ne.s32.totalorder %s43, %s45
    %p52 = scmp.eq.s32.totalorder %s14, 1
    %p53 = por %p51, %p52
    %p54 = scmp.ne.s32.totalorder %s45, %s46
    %p55 = scmp.eq.s32.totalorder %s14, 0
    %p56 = por %p54, %p55
    %p57 = scmp.ne.s32.totalorder %s45, %s46
    %p58 = scmp.eq.s32.totalorder %s15, 1
    %p59 = por %p57, %p58
    %p61 = scmp.ne.s32.totalorder %s46, %s60
    %p62 = scmp.eq.s32.totalorder %s15, 0
    %p63 = por %p61, %p62
    %s65 = sadd.s32 %s64, 1
    %p68 = scmp.eq.s32.totalorder %s9, 1
    %p69 = scmp.ne.s32.totalorder %s64, %s66
    %p70 = scmp.eq.s32.totalorder %s9, 0
    %p71 = por %p69, %p70
    %p72 = scmp.ne.s32.totalorder %s64, %s66
    %p73 = scmp.eq.s32.totalorder %s14, 1
    %p74 = por %p72, %p73
    %p75 = scmp.ne.s32.totalorder %s66, %s67
    %p76 = scmp.eq.s32.totalorder %s14, 0
    %p77 = por %p75, %p76
    %p78 = scmp.ne.s32.totalorder %s66, %s67
    %p79 = scmp.eq.s32.totalorder %s15, 1
    %p80 = por %p78, %p79
    %p82 = scmp.ne.s32.totalorder %s67, %s81
    %p83 = scmp.eq.s32.totalorder %s15, 0
    %p84 = por %p82, %p83
    %s85 = ssub.s32 %s9, %s16
    %p86 = scmp.eq.s32.totalorder %s85, 0
    %s88 = sadd.s32 %s87, 1
    %s89 = scalar_select %p86, %s87, %s88
    %p92 = pneg %p86
    %p93 = scmp.eq.s32.totalorder %s9, 1
    %p94 = por %p92, %p93
    %p95 = scmp.ne.s32.totalorder %s87, %s90
    %p96 = scmp.eq.s32.totalorder %s9, 0
    %p97 = por %p95, %p96
    %p98 = scmp.ne.s32.totalorder %s87, %s90
    %p99 = scmp.eq.s32.totalorder %s14, 1
    %p100 = por %p98, %p99
    %p101 = scmp.ne.s32.totalorder %s90, %s91
    %p102 = scmp.eq.s32.totalorder %s14, 0
    %p103 = por %p101, %p102
    %p104 = scmp.ne.s32.totalorder %s90, %s91
    %p105 = scmp.eq.s32.totalorder %s15, 1
    %p106 = por %p104, %p105
    %p108 = scmp.ne.s32.totalorder %s91, %s107
    %p109 = scmp.eq.s32.totalorder %s15, 0
    %p110 = por %p108, %p109
    %p111 = scmp.le.s32.totalorder 1, %s9
    %p112 = scmp.lt.s32.totalorder %s9, 3
    %p113 = pnand %p111, %p112
    %p114 = pneg %p113
    // Predicated region
    $region9: #{pang_unit_forward.1} parent=5 // pred_check
      _
    $region10: #{pang_unit_forward.1} parent=5 // pred_check_branch
      %116 = sbr.rel (%p113) target = $region12
    $region11: #{pang_unit_forward.1} parent=5 // pred_region
      %s117 = ssub.s32 %s9, 1
      // Predicated region
      $region13: #{pang_unit_forward.1} parent=11 // pred_check
        %p118 = pneg %p56
      $region14: #{pang_unit_forward.1} parent=11 // pred_check_branch
        %120 = sbr.rel (%p118) target = $region16
      $region15: #{pang_unit_forward.1} parent=11 // pred_region
        _
      $region16: #{pang_unit_forward.1} parent=11 // pred_fallthru
        _
      // Predicated region
      $region17: #{pang_unit_forward.1} parent=11 // pred_check
        %p121 = pneg %p77
      $region18: #{pang_unit_forward.1} parent=11 // pred_check_branch
        %123 = sbr.rel (%p121) target = $region20
      $region19: #{pang_unit_forward.1} parent=11 // pred_region
        _
      $region20: #{pang_unit_forward.1} parent=11 // pred_fallthru
        _
    $region12: #{pang_unit_forward.1} parent=5 // pred_fallthru
      _
    %p124 = scmp.lt.s32.totalorder %s9, 2
    // Predicated region
    $region21: #{pang_unit_forward.1} parent=5 // pred_check
      %p125 = pneg %p124
    $region22: #{pang_unit_forward.1} parent=5 // pred_check_branch
      %127 = sbr.rel (%p125) target = $region24
    $region23: #{pang_unit_forward.1} parent=5 // pred_region
      // Predicated region
      $region25: #{pang_unit_forward.1} parent=23 // pred_check
        %p128 = pneg %p29
      $region26: #{pang_unit_forward.1} parent=23 // pred_check_branch
        %130 = sbr.rel (%p128) target = $region28
      $region27: #{pang_unit_forward.1} parent=23 // pred_region
        %p131 = scmp.lt.s32.totalorder %s9, 1
        %s132 = scalar_select %p131, %s9, 1
        %s133 = smul.addr %s132, 2
        %s134 = smul.addr %s133, 4
        %s135 = scalar_lea.vmem %s0, %s134
      $region28: #{pang_unit_forward.1} parent=23 // pred_fallthru
        _
    $region24: #{pang_unit_forward.1} parent=5 // pred_fallthru
      _
    %p136 = scmp.le.s32.totalorder 1, %s9
    %p137 = scmp.lt.s32.totalorder %s9, 3
    %p138 = pnand %p136, %p137
    %p139 = pneg %p138
    // Predicated region
    $region29: #{pang_unit_forward.1} parent=5 // pred_check
      _
    $region30: #{pang_unit_forward.1} parent=5 // pred_check_branch
      %141 = sbr.rel (%p138) target = $region32
    $region31: #{pang_unit_forward.1} parent=5 // pred_region
      %s142 = ssub.s32 %s9, 1
      %p143 = scmp.lt.s32.totalorder %s14, 1
      %s144 = scalar_select %p143, %s14, 1
      %s145 = smul.addr %s144, 2
      %s146 = smul.addr %s145, 4
      %s147 = scalar_lea.vmem %s0, %s146
      %p148 = pneg %p35
      %p149 = pneg %p32
      %p150 = pneg %p56
      %p151 = pneg %p53
      %p152 = pneg %p77
      %p153 = pneg %p74
      %p154 = pneg %p103
      %p155 = pneg %p100
      %p156 = scmp.lt.s32.totalorder %s14, 1
      %s157 = scalar_select %p156, %s14, 1
      %s158 = smul.addr %s157, 4
      %s159 = smul.addr %s158, 8
      %s160 = scalar_lea.vmem %s3, %s159
      %p161 = scmp.lt.s32.totalorder %s14, 1
      %s162 = scalar_select %p161, %s14, 1
      %s163 = smul.addr %s162, 2
      %s164 = smul.addr %s163, 4
      %s165 = scalar_lea.vmem %s0, %s164
      %p166 = scmp.lt.s32.totalorder %s14, 1
      %s167 = scalar_select %p166, %s14, 1
      %s168 = smul.addr %s167, 4
      %s169 = smul.addr %s168, 8
      %s170 = scalar_lea.vmem %s3, %s169
      %v174 = vld [vmem:[%s165] sm:$0xff]
      %176 = vst [vmem:[#allocation1] ss:$2 sm:$0xff] %v174
      %v177 = vld.sshfl [vmem:[#allocation1] sm:$0xff pattern:$0x75316420]
      %v178 = vld.sshfl [vmem:[#allocation1 + $0x8] sm:$0xff pattern:$0x75316420]
      %v181 = vpack.c.bf16 %v178, %v177
      %v183 = vunpack.c.l.b16 %v181
      %v184 = vunpack.c.h.b16 %v181
      %v185 = vpack.c.b16 %v183, %v183
      %v186 = vpack.c.b16 %v184, %v184
      %187 = vrot.lane.b32.xlu0 %v185, 17
      %v188 = vpop.permute.xlu0 %187
      %189 = vrot.lane.b32.xlu0 %v186, 17
      %v190 = vpop.permute.xlu0 %189
      %vm191 = vcmask 138240
      %v192 = vsel %vm191, %v188, %v190
      %vm194 = vcmask 138240
      %v197 = vsel %vm194, 0, %v188
      %v200 = vsel %vm194, %v190, 0
      %v202 = vlaneseq
      %v203 = vand.u32 %v202, 127
      %v204 = vadd.s32 %v203, 128
      %vm205 = vcmp.lt.s32.totalorder %v203, 0
      %v206 = vsub.s32 0, %v203
      %v207 = vsel %vm205, %v206, %v203
      %v208 = vshrl.u32 %v207, 4
      %v209 = vand.u32 %v207, 15
      %v210 = vsub.s32 0, %v209
      %v211 = vsel %vm205, %v210, %v209
      %vm212 = vcmp.lt.s32.totalorder %v204, 0
      %v213 = vsub.s32 0, %v204
      %v214 = vsel %vm212, %v213, %v204
      %v215 = vshrl.u32 %v214, 4
      %v216 = vand.u32 %v214, 15
      %v217 = vsub.s32 0, %v216
      %v218 = vsel %vm212, %v217, %v216
      %vm219 = vcmp.ne.s32.totalorder %v211, 0
      %vm220 = vcmp.ne.s32.totalorder %v218, 0
      %vm221 = vcmp.lt.s32.totalorder %v211, 0
      %vm222 = vcmp.lt.s32.totalorder %v218, 0
      %vm223 = vmand %vm221, %vm219
      %vm224 = vmand %vm222, %vm220
      %v225 = vadd.s32 %v211, 16
      %v226 = vadd.s32 %v218, 16
      %v227 = vsel %vm223, %v225, %v211
      %v228 = vsel %vm224, %v226, %v218
      %v229 = vadd.s32 %v227, 4294967295
      %v230 = vadd.s32 %v228, 4294967295
      %vm231 = vcmp.ge.s32.totalorder %v229, 0
      %vm232 = vcmp.ge.s32.totalorder %v230, 0
      %vm233 = vcmp.lt.s32.totalorder %v229, 16
      %vm234 = vcmp.lt.s32.totalorder %v230, 16
      %vm235 = vmand %vm231, %vm233
      %vm236 = vmand %vm232, %vm234
      %vm237 = vmpackc.low %vm236, %vm235
      %v238 = vsel %vm237, 65537, 0
      %v239 = vperm.slane %v238, 0
      %v240 = vperm.slane %v238, 4
      %v241 = vunpack.c.l.b16 %v239
      %v242 = vunpack.c.h.b16 %v239
      %v243 = vunpack.c.l.b16 0
      %v244 = vunpack.c.h.b16 0
      %vm245 = vcmp.ne.s32.totalorder %v241, %v243
      %vm246 = vcmp.ne.s32.totalorder %v242, %v244
      %vm247 = vmpackc.low %vm246, %vm245
      %v248 = vunpack.c.l.b16 %v240
      %v249 = vunpack.c.h.b16 %v240
      %v250 = vunpack.c.l.b16 0
      %v251 = vunpack.c.h.b16 0
      %vm252 = vcmp.ne.s32.totalorder %v248, %v250
      %vm253 = vcmp.ne.s32.totalorder %v249, %v251
      %vm254 = vmpackc.low %vm253, %vm252
      %v255 = vsel %vm247, %v197, 0
      %v256 = vsel %vm254, %v192, 0
      %v257 = vadd.s32 %v227, 1
      %v258 = vadd.s32 %v228, 1
      %vm259 = vcmp.ge.s32.totalorder %v257, 0
      %vm260 = vcmp.ge.s32.totalorder %v258, 0
      %vm261 = vcmp.lt.s32.totalorder %v257, 16
      %vm262 = vcmp.lt.s32.totalorder %v258, 16
      %vm263 = vmand %vm259, %vm261
      %vm264 = vmand %vm260, %vm262
      %vm265 = vmpackc.low %vm264, %vm263
      %v266 = vsel %vm265, 65537, 0
      %v267 = vperm.slane %v266, 0
      %v268 = vperm.slane %v266, 4
      %269 = vrot.lane.b32.xlu0 %v267, 2
      %v270 = vpop.permute.xlu0 %269
      %271 = vrot.lane.b32.xlu0 %v268, 2
      %v272 = vpop.permute.xlu0 %271
      %vm273 = vcmask 15360
      %v274 = vsel %vm273, %v270, %v272
      %v275 = vunpack.c.l.b16 %v270
      %v276 = vunpack.c.h.b16 %v270
      %v277 = vunpack.c.l.b16 0
      %v278 = vunpack.c.h.b16 0
      %vm279 = vcmp.ne.s32.totalorder %v275, %v277
      %vm280 = vcmp.ne.s32.totalorder %v276, %v278
      %vm281 = vmpackc.low %vm280, %vm279
      %v282 = vunpack.c.l.b16 %v274
      %v283 = vunpack.c.h.b16 %v274
      %v284 = vunpack.c.l.b16 0
      %v285 = vunpack.c.h.b16 0
      %vm286 = vcmp.ne.s32.totalorder %v282, %v284
      %vm287 = vcmp.ne.s32.totalorder %v283, %v285
      %vm288 = vmpackc.low %vm287, %vm286
      %v289 = vunpack.c.l.b16 %v272
      %v290 = vunpack.c.h.b16 %v272
      %v291 = vunpack.c.l.b16 0
      %v292 = vunpack.c.h.b16 0
      %vm293 = vcmp.ne.s32.totalorder %v289, %v291
      %vm294 = vcmp.ne.s32.totalorder %v290, %v292
      %vm295 = vmpackc.low %vm294, %vm293
      %v296 = vsel %vm281, %v197, 0
      %v297 = vsel %vm288, %v192, 0
      %v298 = vsel %vm295, %v200, 0
      %299 = vrot.lane.b32.xlu0 %v239, 16
      %v300 = vpop.permute.xlu0 %299
      %301 = vrot.lane.b32.xlu0 %v240, 16
      %v302 = vpop.permute.xlu0 %301
      %vm303 = vcmask 130048
      %v304 = vsel %vm303, %v300, %v302
      %v305 = vunpack.c.l.b16 %v300
      %v306 = vunpack.c.h.b16 %v300
      %v307 = vunpack.c.l.b16 0
      %v308 = vunpack.c.h.b16 0
      %vm309 = vcmp.ne.s32.totalorder %v305, %v307
      %vm310 = vcmp.ne.s32.totalorder %v306, %v308
      %vm311 = vmpackc.low %vm310, %vm309
      %v312 = vunpack.c.l.b16 %v304
      %v313 = vunpack.c.h.b16 %v304
      %v314 = vunpack.c.l.b16 0
      %v315 = vunpack.c.h.b16 0
      %vm316 = vcmp.ne.s32.totalorder %v312, %v314
      %vm317 = vcmp.ne.s32.totalorder %v313, %v315
      %vm318 = vmpackc.low %vm317, %vm316
      %v319 = vunpack.c.l.b16 %v302
      %v320 = vunpack.c.h.b16 %v302
      %v321 = vunpack.c.l.b16 0
      %v322 = vunpack.c.h.b16 0
      %vm323 = vcmp.ne.s32.totalorder %v319, %v321
      %vm324 = vcmp.ne.s32.totalorder %v320, %v322
      %vm325 = vmpackc.low %vm324, %vm323
      %v326 = vsel %vm311, %v197, 0
      %v327 = vsel %vm318, %v192, 0
      %v328 = vsel %vm325, %v200, 0
      %329 = vrot.lane.b32.xlu0 %v267, 18
      %v330 = vpop.permute.xlu0 %329
      %331 = vrot.lane.b32.xlu0 %v268, 18
      %v332 = vpop.permute.xlu0 %331
      %vm333 = vcmask 146432
      %v334 = vsel %vm333, %v330, %v332
      %v335 = vunpack.c.l.b16 %v330
      %v336 = vunpack.c.h.b16 %v330
      %v337 = vunpack.c.l.b16 0
      %v338 = vunpack.c.h.b16 0
      %vm339 = vcmp.ne.s32.totalorder %v335, %v337
      %vm340 = vcmp.ne.s32.totalorder %v336, %v338
      %vm341 = vmpackc.low %vm340, %vm339
      %v342 = vunpack.c.l.b16 %v334
      %v343 = vunpack.c.h.b16 %v334
      %v344 = vunpack.c.l.b16 0
      %v345 = vunpack.c.h.b16 0
      %vm346 = vcmp.ne.s32.totalorder %v342, %v344
      %vm347 = vcmp.ne.s32.totalorder %v343, %v345
      %vm348 = vmpackc.low %vm347, %vm346
      %v349 = vunpack.c.l.b16 %v332
      %v350 = vunpack.c.h.b16 %v332
      %v351 = vunpack.c.l.b16 0
      %v352 = vunpack.c.h.b16 0
      %vm353 = vcmp.ne.s32.totalorder %v349, %v351
      %vm354 = vcmp.ne.s32.totalorder %v350, %v352
      %vm355 = vmpackc.low %vm354, %vm353
      %v356 = vsel %vm341, %v197, 0
      %v357 = vsel %vm348, %v192, 0
      %v358 = vsel %vm355, %v200, 0
      %359 = vrot.lane.b32.xlu0 %v239, 32
      %v360 = vpop.permute.xlu0 %359
      %361 = vrot.lane.b32.xlu0 %v240, 32
      %v362 = vpop.permute.xlu0 %361
      %vm363 = vcmask 261120
      %v364 = vsel %vm363, %v360, %v362
      %v365 = vunpack.c.l.b16 %v360
      %v366 = vunpack.c.h.b16 %v360
      %v367 = vunpack.c.l.b16 0
      %v368 = vunpack.c.h.b16 0
      %vm369 = vcmp.ne.s32.totalorder %v365, %v367
      %vm370 = vcmp.ne.s32.totalorder %v366, %v368
      %vm371 = vmpackc.low %vm370, %vm369
      %v372 = vunpack.c.l.b16 %v364
      %v373 = vunpack.c.h.b16 %v364
      %v374 = vunpack.c.l.b16 0
      %v375 = vunpack.c.h.b16 0
      %vm376 = vcmp.ne.s32.totalorder %v372, %v374
      %vm377 = vcmp.ne.s32.totalorder %v373, %v375
      %vm378 = vmpackc.low %vm377, %vm376
      %v379 = vunpack.c.l.b16 %v362
      %v380 = vunpack.c.h.b16 %v362
      %v381 = vunpack.c.l.b16 0
      %v382 = vunpack.c.h.b16 0
      %vm383 = vcmp.ne.s32.totalorder %v379, %v381
      %vm384 = vcmp.ne.s32.totalorder %v380, %v382
      %vm385 = vmpackc.low %vm384, %vm383
      %v386 = vsel %vm371, %v197, 0
      %v387 = vsel %vm378, %v192, 0
      %v388 = vsel %vm385, %v200, 0
      %389 = vrot.lane.b32.xlu0 %v267, 34
      %v390 = vpop.permute.xlu0 %389
      %391 = vrot.lane.b32.xlu0 %v268, 34
      %v392 = vpop.permute.xlu0 %391
      %vm393 = vcmask 277504
      %v394 = vsel %vm393, %v390, %v392
      %v395 = vunpack.c.l.b16 %v390
      %v396 = vunpack.c.h.b16 %v390
      %v397 = vunpack.c.l.b16 0
      %v398 = vunpack.c.h.b16 0
      %vm399 = vcmp.ne.s32.totalorder %v395, %v397
      %vm400 = vcmp.ne.s32.totalorder %v396, %v398
      %vm401 = vmpackc.low %vm400, %vm399
      %v402 = vunpack.c.l.b16 %v394
      %v403 = vunpack.c.h.b16 %v394
      %v404 = vunpack.c.l.b16 0
      %v405 = vunpack.c.h.b16 0
      %vm406 = vcmp.ne.s32.totalorder %v402, %v404
      %vm407 = vcmp.ne.s32.totalorder %v403, %v405
      %vm408 = vmpackc.low %vm407, %vm406
      %v409 = vunpack.c.l.b16 %v392
      %v410 = vunpack.c.h.b16 %v392
      %v411 = vunpack.c.l.b16 0
      %v412 = vunpack.c.h.b16 0
      %vm413 = vcmp.ne.s32.totalorder %v409, %v411
      %vm414 = vcmp.ne.s32.totalorder %v410, %v412
      %vm415 = vmpackc.low %vm414, %vm413
      %v416 = vsel %vm401, %v197, 0
      %v417 = vsel %vm408, %v192, 0
      %v418 = vsel %vm415, %v200, 0
      %v421 = vrot.slane %v197, 6
      %v422 = vrot.slane %v192, 6
      %v423 = vrot.slane %v200, 6
      %424 = vrot.lane.b32.xlu0 %v421, 127
      %v425 = vpop.permute.xlu0 %424
      %426 = vrot.lane.b32.xlu0 %v422, 127
      %v427 = vpop.permute.xlu0 %426
      %428 = vrot.lane.b32.xlu0 %v423, 127
      %v429 = vpop.permute.xlu0 %428
      %vm430 = vcmask 1039360
      %v431 = vsel %vm430, %v425, %v427
      %v432 = vsel %vm430, %v427, %v429
      %v436 = vrot.slane %v296, 4
      %v437 = vrot.slane %v297, 4
      %v438 = vrot.slane %v298, 4
      %439 = vrot.lane.b32.xlu0 %v436, 126
      %v440 = vpop.permute.xlu0 %439
      %441 = vrot.lane.b32.xlu0 %v437, 126
      %v442 = vpop.permute.xlu0 %441
      %443 = vrot.lane.b32.xlu0 %v438, 126
      %v444 = vpop.permute.xlu0 %443
      %vm445 = vcmask 1031168
      %v446 = vsel %vm445, %v440, %v442
      %v447 = vsel %vm445, %v442, %v444
      %v451 = vrot.slane %v326, 2
      %v452 = vrot.slane %v327, 2
      %v453 = vrot.slane %v328, 2
      %454 = vrot.lane.b32.xlu0 %v451, 112
      %v455 = vpop.permute.xlu0 %454
      %456 = vrot.lane.b32.xlu0 %v452, 112
      %v457 = vpop.permute.xlu0 %456
      %458 = vrot.lane.b32.xlu0 %v453, 112
      %v459 = vpop.permute.xlu0 %458
      %vm460 = vcmask 916480
      %v461 = vsel %vm460, %v455, %v457
      %v462 = vsel %vm460, %v457, %v459
      %463 = vrot.lane.b32.xlu0 %v197, 111
      %v464 = vpop.permute.xlu0 %463
      %465 = vrot.lane.b32.xlu0 %v192, 111
      %v466 = vpop.permute.xlu0 %465
      %467 = vrot.lane.b32.xlu0 %v200, 111
      %v468 = vpop.permute.xlu0 %467
      %vm469 = vcmask 908288
      %v470 = vsel %vm469, %v464, %v466
      %v471 = vsel %vm469, %v466, %v468
      %v475 = vrot.slane %v356, 6
      %v476 = vrot.slane %v357, 6
      %v477 = vrot.slane %v358, 6
      %478 = vrot.lane.b32.xlu0 %v475, 110
      %v479 = vpop.permute.xlu0 %478
      %480 = vrot.lane.b32.xlu0 %v476, 110
      %v481 = vpop.permute.xlu0 %480
      %482 = vrot.lane.b32.xlu0 %v477, 110
      %v483 = vpop.permute.xlu0 %482
      %vm484 = vcmask 900096
      %v485 = vsel %vm484, %v479, %v481
      %v486 = vsel %vm484, %v481, %v483
      %v490 = vrot.slane %v386, 4
      %v491 = vrot.slane %v387, 4
      %v492 = vrot.slane %v388, 4
      %493 = vrot.lane.b32.xlu0 %v490, 96
      %v494 = vpop.permute.xlu0 %493
      %495 = vrot.lane.b32.xlu0 %v491, 96
      %v496 = vpop.permute.xlu0 %495
      %497 = vrot.lane.b32.xlu0 %v492, 96
      %v498 = vpop.permute.xlu0 %497
      %vm499 = vcmask 785408
      %v500 = vsel %vm499, %v494, %v496
      %v501 = vsel %vm499, %v496, %v498
      %v502 = vrot.slane %v197, 2
      %v503 = vrot.slane %v192, 2
      %v504 = vrot.slane %v200, 2
      %505 = vrot.lane.b32.xlu0 %v502, 95
      %v506 = vpop.permute.xlu0 %505
      %507 = vrot.lane.b32.xlu0 %v503, 95
      %v508 = vpop.permute.xlu0 %507
      %509 = vrot.lane.b32.xlu0 %v504, 95
      %v510 = vpop.permute.xlu0 %509
      %vm511 = vcmask 777216
      %v512 = vsel %vm511, %v506, %v508
      %v513 = vsel %vm511, %v508, %v510
      %517 = vrot.lane.b32.xlu0 %v416, 94
      %v518 = vpop.permute.xlu0 %517
      %519 = vrot.lane.b32.xlu0 %v417, 94
      %v520 = vpop.permute.xlu0 %519
      %521 = vrot.lane.b32.xlu0 %v418, 94
      %v522 = vpop.permute.xlu0 %521
      %vm523 = vcmask 769024
      %v524 = vsel %vm523, %v518, %v520
      %v525 = vsel %vm523, %v520, %v522
      %vm526 = vcmask 1041408
      %v529 = vsel %vm526, %v255, %v431
      %v532 = vsel %vm526, %v256, %v432
      %vm533 = vcmask 1043456
      %v535 = vsel %vm533, %v529, %v446
      %v537 = vsel %vm533, %v532, %v447
      %vm538 = vcmask 1045504
      %v540 = vsel %vm538, %v535, %v461
      %v543 = vsel %vm538, %v537, %v462
      %v547 = vsel %vm526, %v470, %v485
      %v550 = vsel %vm526, %v471, %v486
      %v552 = vsel %vm533, %v547, %v500
      %v554 = vsel %vm533, %v550, %v501
      %v556 = vsel %vm538, %v552, %v512
      %v559 = vsel %vm538, %v554, %v513
      %v561 = vld [vmem:[%s1] sm:$0xf]
      %v562 = vld [vmem:[%s1 + $0x4] sm:$0xf]
      %v563 = vld [vmem:[%s2] sm:$0xff]
      %v564 = vld [vmem:[%s2 + $0x8] sm:$0xff]
      %566 = vset.pattern.permute.xlu0 0
      %567 = vperm.xlu0 %566, %v563
      %v568 = vpop.permute.xlu0 %567
      %571 = vset.pattern.permute.xlu0 0
      %572 = vperm.xlu0 %571, %v564
      %v573 = vpop.permute.xlu0 %572
      %v577 = vunpack.c.l.b16 %v561
      %v578 = vunpack.c.l.b16 %v562
      %v579 = vpack.c.b16 %v578, %v577
      %vm580 = vcmask 293888
      %v582 = vsel %vm580, %v579, 0
      %v585 = vsel %vm526, %v524, 0
      %v588 = vsel %vm526, %v525, 0
      %590 = vmatpush.bf16.msra.mxu0 0
      %591 = vmatpush.bf16.msra.mxu0 0
      %592 = vmatpush.bf16.msra.mxu0 0
      %593 = vmatpush.bf16.msra.mxu0 0
      %594 = vmatpush.bf16.msra.mxu0 0
      %595 = vmatpush.bf16.msra.mxu0 %v585
      %596 = vmatpush.bf16.msra.mxu0 %v556
      %597 = vmatpush.bf16.msra.mxu0 %v540
      %598 = vmatmul.bf16.gmra.mxu0 %v582
      %v599 = vpop.f32.mrf.mxu0
      %v600 = vadd.f32 %v568, %v599
      %v601 = vpop.f32.mrf.mxu0
      %v602 = vadd.f32 %v573, %v601
      %603 = vdwg.mxu0
      %604 = vmatpush.bf16.msra.mxu0 0
      %605 = vmatpush.bf16.msra.mxu0 0
      %606 = vmatpush.bf16.msra.mxu0 0
      %607 = vmatpush.bf16.msra.mxu0 0
      %608 = vmatpush.bf16.msra.mxu0 0
      %609 = vmatpush.bf16.msra.mxu0 %v588
      %610 = vmatpush.bf16.msra.mxu0 %v559
      %611 = vmatpush.bf16.msra.mxu0 %v543
      %612 = vmatmul.bf16.gmra.mxu0 %v582
      %v613 = vpop.f32.mrf.mxu0
      %v614 = vadd.f32 %v568, %v613
      %v615 = vpop.f32.mrf.mxu0
      %v616 = vadd.f32 %v573, %v615
      %617 = vdwg.mxu0
      %v618 = vmax.f32 %v600, 0.0
      %v619 = vmax.f32 %v614, 0.0
      %v620 = vmax.f32 %v602, 0.0
      %v621 = vmax.f32 %v616, 0.0
      %622 = vst [vmem:[%s170] sm:$0xff] %v618
      %623 = vst [vmem:[%s170 + $0x8] sm:$0xff] %v619
      %624 = vst [vmem:[%s170 + $0x10] sm:$0xff] %v620
      %625 = vst [vmem:[%s170 + $0x18] sm:$0xff] %v621
      %p626 = scmp.lt.s32.totalorder %s14, 1
      %s627 = scalar_select %p626, %s14, 1
      %s628 = smul.addr %s627, 4
      %s629 = smul.addr %s628, 8
      %s630 = scalar_lea.vmem %s3, %s629
      // Predicated region
      $region33: #{pang_unit_forward.1} parent=31 // pred_check
        %p631 = pneg %p100
      $region34: #{pang_unit_forward.1} parent=31 // pred_check_branch
        %633 = sbr.rel (%p631) target = $region36
      $region35: #{pang_unit_forward.1} parent=31 // pred_region
        _
      $region36: #{pang_unit_forward.1} parent=31 // pred_fallthru
        _
    $region32: #{pang_unit_forward.1} parent=5 // pred_fallthru
      _
    %p634 = scmp.le.s32.totalorder 2, %s9
    // Predicated region
    $region37: #{pang_unit_forward.1} parent=5 // pred_check
      %p635 = pneg %p634
    $region38: #{pang_unit_forward.1} parent=5 // pred_check_branch
      %637 = sbr.rel (%p635) target = $region40
    $region39: #{pang_unit_forward.1} parent=5 // pred_region
      %s638 = ssub.s32 %s9, 2
      // Predicated region
      $region41: #{pang_unit_forward.1} parent=39 // pred_check
        %p639 = pneg %p106
      $region42: #{pang_unit_forward.1} parent=39 // pred_check_branch
        %641 = sbr.rel (%p639) target = $region44
      $region43: #{pang_unit_forward.1} parent=39 // pred_region
        %p642 = scmp.lt.s32.totalorder %s15, 1
        %s643 = scalar_select %p642, %s15, 1
        %s644 = smul.addr %s643, 4
        %s645 = smul.addr %s644, 8
        %s646 = scalar_lea.vmem %s3, %s645
      $region44: #{pang_unit_forward.1} parent=39 // pred_fallthru
        _
    $region40: #{pang_unit_forward.1} parent=5 // pred_fallthru
      _
  $region6: #{pang_unit_forward.1} parent=0 // loop_footer
    %s13 = sadd.s32 1, %s9
  $region7: #{pang_unit_forward.1} parent=0 // loop_footer_branch
    %8 = sbr.rel target = $region3
  $region8: #{pang_unit_forward.1} parent=0 // loop_exit
    _

</llo_original>
